<compile_context>
chip_gen: v7x
topology: tpu7x:2x2x1
jax: 0.10.0
libtpu: 0.0.40
codegen_flags: <defaults>
</compile_context>

<pallas_src>
import functools

import numpy as np
import jax
import jax.numpy as jnp
from jax import lax
from jax.experimental import pallas as pl
from jax.experimental.pallas import tpu as pltpu


# ----------------------- deterministic parameter setup ----------------------

def _round_up(a, b):
    return ((a + b - 1) // b) * b


def _cdiv(a, b):
    return -(-a // b)


def _hamming_periodic(win_len):
    # scipy.signal.get_window('hamming', win_len, fftbins=True)
    n = np.arange(win_len)
    return 0.54 - 0.46 * np.cos(2.0 * np.pi * n / win_len)


def init_kernels(win_len, win_inc, fft_len, win_type="hamming"):
    if win_type is None or win_type == "None":
        window = np.ones(win_len)
    elif win_type == "hamming":
        window = _hamming_periodic(win_len)
    else:
        raise ValueError(f"unsupported win_type: {win_type}")
    N = fft_len
    fourier_basis = np.fft.rfft(np.eye(N))[:win_len]            # (win_len, N//2+1)
    real_kernel = np.real(fourier_basis)
    imag_kernel = np.imag(fourier_basis)
    kernel = np.concatenate([real_kernel, imag_kernel], 1).T    # (fft_len+2, win_len)
    kernel = kernel * window                                     # broadcast over taps
    return kernel.astype(np.float32), window.astype(np.float32)


# --------------------------------- kernel -----------------------------------

def _stft_kernel(sig_ref, tail_ref, wt_ref, mag_ref, ph_ref,
                 *, q, stride, win_len, d_pad, dim):
    # sig_ref:  (1, TF, stride)  current tile's frame-rows; row m = samples
    #                            [m*stride, (m+1)*stride) of the padded signal.
    # tail_ref: (1, TB, stride)  the next TB rows (overlap with the next tile).
    # wt_ref:   (2*d_pad, win_len) packed real|imag Fourier basis (resident).
    # mag_ref/ph_ref: (1, dim, TF) lane-dense outputs (frames on the lane axis).
    tf = sig_ref.shape[1]
    rows = jnp.concatenate([sig_ref[0], tail_ref[0]], axis=0)     # (TF+TB, stride)

    # In-VMEM framing: frame f, tap j*stride + r  ==  rows[f + j, r].
    parts = [rows[j:j + tf, :] for j in range(q)]                 # q shifted slices
    frames = jnp.concatenate(parts, axis=-1)                      # (TF, q*stride)
    if q * stride != win_len:
        frames = frames[:, :win_len]                              # (TF, win_len)

    # Single fused matmul, contracting the tap axis of both operands (NT form);
    # bf16 operands, f32 accumulation, single-pass MXU precision.
    acc = lax.dot_general(wt_ref[...], frames,
                          dimension_numbers=(((1,), (1,)), ((), ())),
                          preferred_element_type=jnp.float32)     # (2*d_pad, TF)

    real = acc[:dim, :]                                           # sublane-aligned starts
    imag = acc[d_pad:d_pad + dim, :]
    mag_ref[0] = jnp.sqrt(real * real + imag * imag).astype(mag_ref.dtype)
    ph_ref[0] = jnp.arctan2(imag, real).astype(ph_ref.dtype)


# -------------------------------- wrapper -----------------------------------

def conv_stft_pallas(x, win_len, win_inc, fft_len, win_type="hamming",
                     compute_dtype=jnp.bfloat16, out_dtype=jnp.float32,
                     frame_tile=1024):
    """feature_type='real' path of ConvSTFT: returns (mags, phase), each (B, dim, F)."""
    # TODO(synk): feature_type='complex' (raw real|imag conv output) path not returned.
    kernel, _ = init_kernels(win_len, win_inc, fft_len, win_type)   # (2*dim, win_len)
    dim = fft_len // 2 + 1
    d_pad = _round_up(dim, 8)               # dim lives on the sublane axis
    wt = np.zeros((2 * d_pad, win_len), np.float32)
    wt[:dim] = kernel[:dim]                 # real basis rows
    wt[d_pad:d_pad + dim] = kernel[dim:]    # imag basis rows
    wt = jnp.asarray(wt).astype(compute_dtype)

    if x.ndim == 2:
        x = x[:, None, :]                   # (B, 1, T)
    B, _, T = x.shape
    stride = win_inc

    # Padding identical to the PyTorch module (folded into one jnp.pad below).
    pad_len = T % stride
    p1 = (stride - pad_len) // 2 if pad_len != 0 else 0
    p2 = win_len - stride
    Lp = T + 2 * p1 + 2 * p2
    num_frames = (Lp - win_len) // stride + 1
    q = _cdiv(win_len, stride)

    # ---- frame-tile / grid sizing (>=2 tiles whenever possible, for v7x) ----
    TF = min(max(128, _round_up(frame_tile, 128)), _round_up(num_frames, 128))
    n_tiles = _cdiv(num_frames, TF)
    if B * n_tiles < 2 and num_frames > 128:
        TF = max(128, _round_up(_cdiv(num_frames, 2), 128))
        n_tiles = _cdiv(num_frames, TF)

    # ---- overlap ("tail") rows between consecutive frame tiles ----
    TB = _round_up(max(q - 1, 1), 8)
    if TF % TB != 0:
        TB = TF                              # fallback: read the whole next tile
    tail_step = TF // TB

    # ---- pad + (free) reshape of the signal into (B, M, stride) frame-rows ----
    M = max(n_tiles * TF + TB, _cdiv(Lp, stride))
    right_extra = M * stride - Lp
    sig = x[:, 0, :].astype(compute_dtype)   # cast BEFORE padding (half the traffic)
    sig = jnp.pad(sig, ((0, 0), (p1 + p2, p1 + p2 + right_extra)))
    sig = sig.reshape(B, M, stride)          # free dim-split reshape

    out_sds = jax.ShapeDtypeStruct((B, dim, num_frames), out_dtype)
    kern = functools.partial(_stft_kernel, q=q, stride=stride,
                             win_len=win_len, d_pad=d_pad, dim=dim)

    mags, phase = pl.pallas_call(
        kern,
        out_shape=(out_sds, out_sds),
        grid_spec=pl.GridSpec(
            grid=(B, n_tiles),
            in_specs=[
                # current tile's TF frame-rows
                pl.BlockSpec((1, TF, stride), lambda b, i: (b, i, 0)),
                # first TB rows of the *next* tile (overlap)
                pl.BlockSpec((1, TB, stride),
                             lambda b, i: (b, (i + 1) * tail_step, 0)),
                # resident packed Fourier basis
                pl.BlockSpec((2 * d_pad, win_len), lambda b, i: (0, 0)),
            ],
            out_specs=[
                pl.BlockSpec((1, dim, TF), lambda b, i: (b, 0, i)),
                pl.BlockSpec((1, dim, TF), lambda b, i: (b, 0, i)),
            ]),
        compiler_params=pltpu.CompilerParams(
            dimension_semantics=("parallel", "parallel"),
            vmem_limit_bytes=32 * 1024 * 1024),
    )(sig, sig, wt)

    return mags, phase


# ------------------------------ reference check -----------------------------

def conv_stft_reference(x, win_len, win_inc, fft_len, win_type="hamming",
                        compute_dtype=jnp.float32,
                        precision=lax.Precision.HIGHEST):
    kernel, _ = init_kernels(win_len, win_inc, fft_len, win_type)
    w = jnp.asarray(kernel)[:, None, :].astype(compute_dtype)   # (O, I=1, K)
    if x.ndim == 2:
        x = x[:, None, :]
    T = x.shape[-1]
    pad_len = T % win_inc
    if pad_len != 0:
        p = (win_inc - pad_len) // 2
        x = jnp.pad(x, ((0, 0), (0, 0), (p, p)))
    p2 = win_len - win_inc
    x = jnp.pad(x, ((0, 0), (0, 0), (p2, p2)))
    out = lax.conv_general_dilated(
        x.astype(compute_dtype), w, (win_inc,), 'VALID',
        dimension_numbers=('NCH', 'OIH', 'NCH'),
        preferred_element_type=jnp.float32,
        precision=precision)
    dim = fft_len // 2 + 1
    r, im = out[:, :dim, :], out[:, dim:, :]
    return jnp.sqrt(r * r + im * im), jnp.arctan2(im, r)


def _check(x, win_len, win_inc, fft_len, coarse_atol=1.5e-1):
    stft = jax.jit(lambda inp: conv_stft_pallas(inp, win_len, win_inc, fft_len))
    mags, phase = stft(x)
    jax.block_until_ready((mags, phase))

    # 1) Tight check against a reference using the same bf16 operands / f32
    #    accumulation (isolates kernel correctness from the precision choice).
    ref_m, ref_p = conv_stft_reference(x, win_len, win_inc, fft_len,
                                       compute_dtype=jnp.bfloat16,
                                       precision=lax.Precision.DEFAULT)
    assert mags.shape == ref_m.shape and phase.shape == ref_p.shape
    assert bool(jnp.allclose(mags, ref_m, rtol=1e-3, atol=1e-3)), "mags mismatch"
    scale = float(jnp.max(ref_m))
    dphi = jnp.abs(jnp.mod(phase - ref_p + jnp.pi, 2.0 * jnp.pi) - jnp.pi)
    dphi = jnp.where(ref_m > 1e-2 * scale, dphi, 0.0)  # phase ill-conditioned at ~0 bins
    assert float(jnp.max(dphi)) < 2e-2, "phase mismatch"

    # 2) Coarse sanity against the exact float32 reference (bf16 matmul tolerance).
    ref_m32, _ = conv_stft_reference(x, win_len, win_inc, fft_len,
                                     compute_dtype=jnp.float32,
                                     precision=lax.Precision.HIGHEST)
    assert bool(jnp.allclose(mags, ref_m32, rtol=5e-2, atol=coarse_atol)), \
        "mags far from f32 reference"


if __name__ == "__main__":
    win_len, win_inc, fft_len = 64, 16, 64
    key = jax.random.PRNGKey(0)
    k1, k2 = jax.random.split(key)

    # Small case: B=2, single frame tile per batch element (ragged output tile).
    x1 = jax.random.normal(k1, (2, 256), dtype=jnp.float32)
    _check(x1, win_len, win_inc, fft_len)

    # Longer single-batch case: exercises the multi-tile path, the tile-overlap
    # ("tail") rows with real data, and the >=2-tiles grid-splitting heuristic.
    x2 = jax.random.normal(k2, (1, 2100), dtype=jnp.float32)
    _check(x2, win_len, win_inc, fft_len, coarse_atol=2.5e-1)

    print("KERNEL_OK")
</pallas_src>

<mosaic_0001>
module attributes {stable_mosaic.version = 11 : i64} {
  func.func @_stft_kernel(%arg0: i32, %arg1: i32, %arg2: memref<1x128x16xbf16, #tpu.memory_space<vmem>>, %arg3: memref<1x8x16xbf16, #tpu.memory_space<vmem>>, %arg4: memref<80x64xbf16, #tpu.memory_space<vmem>>, %arg5: memref<1x33x128xf32, #tpu.memory_space<vmem>>, %arg6: memref<1x33x128xf32, #tpu.memory_space<vmem>>) attributes {dimension_semantics = [#tpu.dimension_semantics<parallel>, #tpu.dimension_semantics<parallel>], iteration_bounds = array<i64: 2, 1>, scalar_prefetch = 0 : i64, scratch_operands = 0 : i64, tpu.core_type = #tpu.core_type<tc>, window_params = [{transform_indices = @transform_0, window_bounds = array<i64: 1, 128, 16>}, {transform_indices = @transform_1, window_bounds = array<i64: 1, 8, 16>}, {pipeline_mode = #tpu.pipeline_mode<synchronous>, transform_indices = @transform_2, window_bounds = array<i64: 80, 64>}, {transform_indices = @transform_3, window_bounds = array<i64: 1, 33, 128>}, {transform_indices = @transform_4, window_bounds = array<i64: 1, 33, 128>}]} {
    %c0 = arith.constant 0 : index
    %c0_0 = arith.constant 0 : index
    %c0_1 = arith.constant 0 : index
    %0 = vector.load %arg2[%c0, %c0_0, %c0_1] : memref<1x128x16xbf16, #tpu.memory_space<vmem>>, vector<1x128x16xbf16>
    %1 = vector.shape_cast %0 : vector<1x128x16xbf16> to vector<128x16xbf16>
    %c0_2 = arith.constant 0 : index
    %c0_3 = arith.constant 0 : index
    %c0_4 = arith.constant 0 : index
    %2 = vector.load %arg3[%c0_2, %c0_3, %c0_4] : memref<1x8x16xbf16, #tpu.memory_space<vmem>>, vector<1x8x16xbf16>
    %3 = vector.shape_cast %2 : vector<1x8x16xbf16> to vector<8x16xbf16>
    %4 = tpu.concatenate %1, %3 in 0 : vector<128x16xbf16>, vector<8x16xbf16> -> vector<136x16xbf16>
    %5 = vector.extract_strided_slice %4 {offsets = [0, 0], sizes = [128, 16], strides = [1, 1]} : vector<136x16xbf16> to vector<128x16xbf16>
    %6 = vector.extract_strided_slice %4 {offsets = [1, 0], sizes = [128, 16], strides = [1, 1]} : vector<136x16xbf16> to vector<128x16xbf16>
    %7 = vector.extract_strided_slice %4 {offsets = [2, 0], sizes = [128, 16], strides = [1, 1]} : vector<136x16xbf16> to vector<128x16xbf16>
    %8 = vector.extract_strided_slice %4 {offsets = [3, 0], sizes = [128, 16], strides = [1, 1]} : vector<136x16xbf16> to vector<128x16xbf16>
    %9 = tpu.concatenate %5, %6, %7, %8 in 1 : vector<128x16xbf16>, vector<128x16xbf16>, vector<128x16xbf16>, vector<128x16xbf16> -> vector<128x64xbf16>
    %c0_5 = arith.constant 0 : index
    %c0_6 = arith.constant 0 : index
    %10 = vector.load %arg4[%c0_5, %c0_6] : memref<80x64xbf16, #tpu.memory_space<vmem>>, vector<80x64xbf16>
    %cst = arith.constant dense<0.000000e+00> : vector<80x128xf32>
    %11 = tpu.matmul %10, %9, %cst {dimension_numbers = #tpu.dot_dimension_numbers<[1], [1], [0], [0], [0, 0, 1, 0], [], []>} : vector<80x64xbf16>, vector<128x64xbf16>, vector<80x128xf32> -> vector<80x128xf32>
    %12 = vector.extract_strided_slice %11 {offsets = [0, 0], sizes = [33, 128], strides = [1, 1]} : vector<80x128xf32> to vector<33x128xf32>
    %13 = vector.extract_strided_slice %11 {offsets = [40, 0], sizes = [33, 128], strides = [1, 1]} : vector<80x128xf32> to vector<33x128xf32>
    %14 = arith.mulf %12, %12 : vector<33x128xf32>
    %15 = arith.mulf %13, %13 : vector<33x128xf32>
    %16 = arith.addf %14, %15 : vector<33x128xf32>
    %17 = math.sqrt %16 : vector<33x128xf32>
    %c0_7 = arith.constant 0 : index
    %c0_8 = arith.constant 0 : index
    %c0_9 = arith.constant 0 : index
    %18 = vector.load %arg5[%c0_7, %c0_8, %c0_9] : memref<1x33x128xf32, #tpu.memory_space<vmem>>, vector<1x33x128xf32>
    %19 = vector.shape_cast %18 : vector<1x33x128xf32> to vector<33x128xf32>
    %20 = vector.shape_cast %17 : vector<33x128xf32> to vector<1x33x128xf32>
    tpu.vector_store %arg5[%c0_7, %c0_8, %c0_9], %20 {strides = array<i32>} : memref<1x33x128xf32, #tpu.memory_space<vmem>>, vector<1x33x128xf32>,
    %21 = math.atan2 %13, %12 : vector<33x128xf32>
    %c0_10 = arith.constant 0 : index
    %c0_11 = arith.constant 0 : index
    %c0_12 = arith.constant 0 : index
    %22 = vector.load %arg6[%c0_10, %c0_11, %c0_12] : memref<1x33x128xf32, #tpu.memory_space<vmem>>, vector<1x33x128xf32>
    %23 = vector.shape_cast %22 : vector<1x33x128xf32> to vector<33x128xf32>
    %24 = vector.shape_cast %21 : vector<33x128xf32> to vector<1x33x128xf32>
    tpu.vector_store %arg6[%c0_10, %c0_11, %c0_12], %24 {strides = array<i32>} : memref<1x33x128xf32, #tpu.memory_space<vmem>>, vector<1x33x128xf32>,
    return
  }
  func.func @transform_0(%arg0: i32, %arg1: i32) -> (i32, i32, i32) {
    %c0_i32 = arith.constant 0 : i32
    %c0_i32_0 = arith.constant 0 : i32
    return %arg0, %arg1, %c0_i32 : i32, i32, i32
  }
  func.func @transform_1(%arg0: i32, %arg1: i32) -> (i32, i32, i32) {
    %c1_i32 = arith.constant 1 : i32
    %0 = arith.addi %arg1, %c1_i32 : i32
    %c16_i32 = arith.constant 16 : i32
    %1 = arith.muli %0, %c16_i32 : i32
    %c0_i32 = arith.constant 0 : i32
    %c0_i32_0 = arith.constant 0 : i32
    return %arg0, %1, %c0_i32 : i32, i32, i32
  }
  func.func @transform_2(%arg0: i32, %arg1: i32) -> (i32, i32) {
    %c0_i32 = arith.constant 0 : i32
    %c0_i32_0 = arith.constant 0 : i32
    %c0_i32_1 = arith.constant 0 : i32
    return %c0_i32, %c0_i32_0 : i32, i32
  }
  func.func @transform_3(%arg0: i32, %arg1: i32) -> (i32, i32, i32) {
    %c0_i32 = arith.constant 0 : i32
    %c0_i32_0 = arith.constant 0 : i32
    return %arg0, %c0_i32, %arg1 : i32, i32, i32
  }
  func.func @transform_4(%arg0: i32, %arg1: i32) -> (i32, i32, i32) {
    %c0_i32 = arith.constant 0 : i32
    %c0_i32_0 = arith.constant 0 : i32
    return %arg0, %c0_i32, %arg1 : i32, i32, i32
  }
}

</mosaic_0001>

<llo_original>
// kernel: _lambda_.1
$region0: #{_lambda_.1}
  #allocation0 [shape = 'u32[]', space=smem, size = 0x4, offset = 0x4, fixed_abs, tag = 'smem constant byte address 0x4 - core index']
  #allocation1 [shape = 'u32[144,128]{1,0:T(1,128)}', space=vmem, size = 0x12000, scoped, tag = 'internal scratch']
  %s0 = inlined_call_operand.vmem [shape: bf16[2,136,16], index: 0, kind: input, shape index: {}, may-alias: {0,1}]
  %s1 = inlined_call_operand.vmem [shape: bf16[2,136,16], index: 1, kind: input, shape index: {}, may-alias: {0,1}]
  %s2 = inlined_call_operand.vmem [shape: bf16[80,64], index: 2, kind: input, shape index: {}]
  %s3 = inlined_call_operand.vmem [shape: f32[2,33,19], index: 3, kind: output, shape index: {0}]
  %s4 = inlined_call_operand.vmem [shape: f32[2,33,19], index: 4, kind: output, shape index: {1}]
  %5 = xla_tuple %s3, %s4
  %s6 = sld [smem:[#allocation0]]
  $region53: #{_lambda_.1} parent=0
    _
  %s8 = ssub.s32 1, %s6
  %s9 = scalar_select 0, %s8, %s6
  loop: start=0, step=1, limit=4
  $region2: #{_lambda_.1} parent=0 // loop_pre_header
    _
  $region3: #{_lambda_.1} parent=0 // loop_header
    %s11 = sphi 0, %s15
    %p12 = scmp.ge.s32.totalorder %s11, 4
    %s18 = sphi 0, %s30
    %s19 = sphi 0, %s26
    %s20 = sphi 0, %s18
    %s21 = sphi 0, %s19
    %s22 = sphi 0, %s20
    %s23 = sphi 0, %s21
    %s35 = sphi 0, %s37
    %s38 = sphi 0, %s35
    %s39 = sphi 0, %s38
    %s55 = sphi 0, %s39
    %s67 = sphi 0, %s69
    %s70 = sphi 0, %s67
    %s71 = sphi 0, %s70
    %s87 = sphi 0, %s71
    %s91 = sphi 0, %s91
    %s93 = sphi 0, %s91
    %s94 = sphi 0, %s93
    %s108 = sphi 0, %s94
    %s116 = sphi 0, %s118
    %s119 = sphi 0, %s116
    %s120 = sphi 0, %s119
    %s136 = sphi 0, %s120
    %s144 = sphi 0, %s146
    %s147 = sphi 0, %s144
    %s148 = sphi 0, %s147
    %s164 = sphi 0, %s148
  $region4: #{_lambda_.1} parent=0 // loop_header_branch
    %14 = sbr.rel (%p12) target = $region8
  $region5: #{_lambda_.1} parent=0 // loop_body
    %s16 = ssub.s32 %s11, 1
    %s17 = ssub.s32 %s11, 2
    %s24 = sadd.s32 1, %s19
    %p25 = scmp.ge.s32.totalorder %s24, 1
    %s26 = scalar_select %p25, 0, %s24
    %s27 = sadd.s32 1, %s18
    %s28 = scalar_select %p25, %s27, %s18
    %p29 = scmp.ge.s32.totalorder %s28, 2
    %s30 = scalar_select %p29, 0, %s28
    %s31 = ssub.s32 %s18, %s30
    %s32 = ssub.s32 %s19, %s26
    %s33 = sor.u32 %s31, %s32
    %p34 = scmp.eq.s32.totalorder %s33, 0
    %s36 = sadd.s32 %s35, 1
    %s37 = scalar_select %p34, %s35, %s36
    %p40 = pneg %p34
    %p41 = scmp.eq.s32.totalorder %s11, 1
    %p42 = por %p40, %p41
    %p43 = scmp.ne.s32.totalorder %s35, %s38
    %p44 = scmp.eq.s32.totalorder %s11, 0
    %p45 = por %p43, %p44
    %p46 = scmp.ne.s32.totalorder %s35, %s38
    %p47 = scmp.eq.s32.totalorder %s16, 1
    %p48 = por %p46, %p47
    %p49 = scmp.ne.s32.totalorder %s38, %s39
    %p50 = scmp.eq.s32.totalorder %s16, 0
    %p51 = por %p49, %p50
    %p52 = scmp.ne.s32.totalorder %s38, %s39
    %p53 = scmp.eq.s32.totalorder %s17, 1
    %p54 = por %p52, %p53
    %p56 = scmp.ne.s32.totalorder %s39, %s55
    %p57 = scmp.eq.s32.totalorder %s17, 0
    %p58 = por %p56, %p57
    %s59 = sadd.s32 %s19, 1
    %s60 = smul.u32 %s59, 16
    %s61 = sadd.s32 %s26, 1
    %s62 = smul.u32 %s61, 16
    %s63 = ssub.s32 %s18, %s30
    %s64 = ssub.s32 %s60, %s62
    %s65 = sor.u32 %s63, %s64
    %p66 = scmp.eq.s32.totalorder %s65, 0
    %s68 = sadd.s32 %s67, 1
    %s69 = scalar_select %p66, %s67, %s68
    %p72 = pneg %p66
    %p73 = scmp.eq.s32.totalorder %s11, 1
    %p74 = por %p72, %p73
    %p75 = scmp.ne.s32.totalorder %s67, %s70
    %p76 = scmp.eq.s32.totalorder %s11, 0
    %p77 = por %p75, %p76
    %p78 = scmp.ne.s32.totalorder %s67, %s70
    %p79 = scmp.eq.s32.totalorder %s16, 1
    %p80 = por %p78, %p79
    %p81 = scmp.ne.s32.totalorder %s70, %s71
    %p82 = scmp.eq.s32.totalorder %s16, 0
    %p83 = por %p81, %p82
    %p84 = scmp.ne.s32.totalorder %s70, %s71
    %p85 = scmp.eq.s32.totalorder %s17, 1
    %p86 = por %p84, %p85
    %p88 = scmp.ne.s32.totalorder %s71, %s87
    %p89 = scmp.eq.s32.totalorder %s17, 0
    %p90 = por %p88, %p89
    %s92 = sadd.s32 %s91, 1
    %p95 = scmp.eq.s32.totalorder %s11, 1
    %p96 = scmp.ne.s32.totalorder %s91, %s93
    %p97 = scmp.eq.s32.totalorder %s11, 0
    %p98 = por %p96, %p97
    %p99 = scmp.ne.s32.totalorder %s91, %s93
    %p100 = scmp.eq.s32.totalorder %s16, 1
    %p101 = por %p99, %p100
    %p102 = scmp.ne.s32.totalorder %s93, %s94
    %p103 = scmp.eq.s32.totalorder %s16, 0
    %p104 = por %p102, %p103
    %p105 = scmp.ne.s32.totalorder %s93, %s94
    %p106 = scmp.eq.s32.totalorder %s17, 1
    %p107 = por %p105, %p106
    %p109 = scmp.ne.s32.totalorder %s94, %s108
    %p110 = scmp.eq.s32.totalorder %s17, 0
    %p111 = por %p109, %p110
    %s112 = ssub.s32 %s18, %s30
    %s113 = ssub.s32 %s19, %s26
    %s114 = sor.u32 %s112, %s113
    %p115 = scmp.eq.s32.totalorder %s114, 0
    %s117 = sadd.s32 %s116, 1
    %s118 = scalar_select %p115, %s116, %s117
    %p121 = pneg %p115
    %p122 = scmp.eq.s32.totalorder %s11, 1
    %p123 = por %p121, %p122
    %p124 = scmp.ne.s32.totalorder %s116, %s119
    %p125 = scmp.eq.s32.totalorder %s11, 0
    %p126 = por %p124, %p125
    %p127 = scmp.ne.s32.totalorder %s116, %s119
    %p128 = scmp.eq.s32.totalorder %s16, 1
    %p129 = por %p127, %p128
    %p130 = scmp.ne.s32.totalorder %s119, %s120
    %p131 = scmp.eq.s32.totalorder %s16, 0
    %p132 = por %p130, %p131
    %p133 = scmp.ne.s32.totalorder %s119, %s120
    %p134 = scmp.eq.s32.totalorder %s17, 1
    %p135 = por %p133, %p134
    %p137 = scmp.ne.s32.totalorder %s120, %s136
    %p138 = scmp.eq.s32.totalorder %s17, 0
    %p139 = por %p137, %p138
    %s140 = ssub.s32 %s18, %s30
    %s141 = ssub.s32 %s19, %s26
    %s142 = sor.u32 %s140, %s141
    %p143 = scmp.eq.s32.totalorder %s142, 0
    %s145 = sadd.s32 %s144, 1
    %s146 = scalar_select %p143, %s144, %s145
    %p149 = pneg %p143
    %p150 = scmp.eq.s32.totalorder %s11, 1
    %p151 = por %p149, %p150
    %p152 = scmp.ne.s32.totalorder %s144, %s147
    %p153 = scmp.eq.s32.totalorder %s11, 0
    %p154 = por %p152, %p153
    %p155 = scmp.ne.s32.totalorder %s144, %s147
    %p156 = scmp.eq.s32.totalorder %s16, 1
    %p157 = por %p155, %p156
    %p158 = scmp.ne.s32.totalorder %s147, %s148
    %p159 = scmp.eq.s32.totalorder %s16, 0
    %p160 = por %p158, %p159
    %p161 = scmp.ne.s32.totalorder %s147, %s148
    %p162 = scmp.eq.s32.totalorder %s17, 1
    %p163 = por %p161, %p162
    %p165 = scmp.ne.s32.totalorder %s148, %s164
    %p166 = scmp.eq.s32.totalorder %s17, 0
    %p167 = por %p165, %p166
    %p168 = scmp.le.s32.totalorder 1, %s11
    %p169 = scmp.lt.s32.totalorder %s11, 3
    %p170 = pnand %p168, %p169
    %p171 = pneg %p170
    // Predicated region
    $region9: #{_lambda_.1} parent=5 // pred_check
      _
    $region10: #{_lambda_.1} parent=5 // pred_check_branch
      %173 = sbr.rel (%p170) target = $region12
    $region11: #{_lambda_.1} parent=5 // pred_region
      %s174 = ssub.s32 %s11, 1
      // Predicated region
      $region13: #{_lambda_.1} parent=11 // pred_check
        %p175 = pneg %p104
      $region14: #{_lambda_.1} parent=11 // pred_check_branch
        %177 = sbr.rel (%p175) target = $region16
      $region15: #{_lambda_.1} parent=11 // pred_region
        _
      $region16: #{_lambda_.1} parent=11 // pred_fallthru
        _
    $region12: #{_lambda_.1} parent=5 // pred_fallthru
      _
    %p178 = scmp.lt.s32.totalorder %s11, 2
    // Predicated region
    $region17: #{_lambda_.1} parent=5 // pred_check
      %p179 = pneg %p178
    $region18: #{_lambda_.1} parent=5 // pred_check_branch
      %181 = sbr.rel (%p179) target = $region20
    $region19: #{_lambda_.1} parent=5 // pred_region
      // Predicated region
      $region21: #{_lambda_.1} parent=19 // pred_check
        %p182 = pneg %p45
      $region22: #{_lambda_.1} parent=19 // pred_check_branch
        %184 = sbr.rel (%p182) target = $region24
      $region23: #{_lambda_.1} parent=19 // pred_region
        %s185 = smul.u32 16, %s19
        %s186 = ssub.s32 17, %s185
        %p187 = scmp.lt.s32.totalorder %s186, 16
        %s188 = scalar_select %p187, %s186, 16
        %s189 = smul.u32 64, %s188
        %p190 = scmp.lt.s32.totalorder %s18, 1
        %s191 = scalar_select %p190, %s18, 1
        %p192 = scmp.lt.s32.totalorder %s185, 16
        %s193 = scalar_select %p192, %s185, 16
        %s194 = smul.addr %s191, 17
        %s195 = sadd.s32 %s193, %s194
        %s196 = smul.addr %s195, 4
        %s197 = scalar_lea.vmem %s0, %s196
        %s198 = smul.u32 16, %s19
        %s199 = ssub.s32 17, %s198
        %p200 = scmp.lt.s32.totalorder %s199, 16
        %s201 = scalar_select %p200, %s199, 16
        %s202 = smul.u32 64, %s201
      $region24: #{_lambda_.1} parent=19 // pred_fallthru
        _
      // Predicated region
      $region25: #{_lambda_.1} parent=19 // pred_check
        %p203 = pneg %p77
      $region26: #{_lambda_.1} parent=19 // pred_check_branch
        %205 = sbr.rel (%p203) target = $region28
      $region27: #{_lambda_.1} parent=19 // pred_region
        %s206 = sadd.s32 %s19, 1
        %s207 = smul.u32 %s206, 16
        %p208 = scmp.lt.s32.totalorder %s18, 1
        %s209 = scalar_select %p208, %s18, 1
        %p210 = scmp.lt.s32.totalorder %s207, 16
        %s211 = scalar_select %p210, %s207, 16
        %s212 = smul.addr %s209, 17
        %s213 = sadd.s32 %s211, %s212
        %s214 = smul.addr %s213, 4
        %s215 = scalar_lea.vmem %s1, %s214
        %s216 = sadd.s32 %s19, 1
        %s217 = smul.u32 %s216, 16
      $region28: #{_lambda_.1} parent=19 // pred_fallthru
        _
    $region20: #{_lambda_.1} parent=5 // pred_fallthru
      _
    %p218 = scmp.le.s32.totalorder 1, %s11
    %p219 = scmp.lt.s32.totalorder %s11, 3
    %p220 = pnand %p218, %p219
    %p221 = pneg %p220
    // Predicated region
    $region29: #{_lambda_.1} parent=5 // pred_check
      _
    $region30: #{_lambda_.1} parent=5 // pred_check_branch
      %223 = sbr.rel (%p220) target = $region32
    $region31: #{_lambda_.1} parent=5 // pred_region
      %s224 = ssub.s32 %s11, 1
      %s225 = smul.u32 16, %s21
      %s226 = ssub.s32 17, %s225
      %p227 = scmp.lt.s32.totalorder %s226, 16
      %s228 = scalar_select %p227, %s226, 16
      %s229 = smul.u32 64, %s228
      %p230 = scmp.lt.s32.totalorder %s20, 1
      %s231 = scalar_select %p230, %s20, 1
      %p232 = scmp.lt.s32.totalorder %s225, 16
      %s233 = scalar_select %p232, %s225, 16
      %s234 = smul.addr %s231, 17
      %s235 = sadd.s32 %s233, %s234
      %s236 = smul.addr %s235, 4
      %s237 = scalar_lea.vmem %s0, %s236
      %p238 = pneg %p51
      %p239 = pneg %p48
      %s240 = sadd.s32 %s21, 1
      %s241 = smul.u32 %s240, 16
      %p242 = scmp.lt.s32.totalorder %s20, 1
      %s243 = scalar_select %p242, %s20, 1
      %p244 = scmp.lt.s32.totalorder %s241, 16
      %s245 = scalar_select %p244, %s241, 16
      %s246 = smul.addr %s243, 17
      %s247 = sadd.s32 %s245, %s246
      %s248 = smul.addr %s247, 4
      %s249 = scalar_lea.vmem %s1, %s248
      %p250 = pneg %p83
      %p251 = pneg %p80
      %p252 = pneg %p104
      %p253 = pneg %p101
      %p254 = pneg %p132
      %p255 = pneg %p129
      %p256 = scmp.lt.s32.totalorder %s20, 1
      %s257 = scalar_select %p256, %s20, 1
      %p258 = scmp.lt.s32.totalorder %s21, 0
      %s259 = scalar_select %p258, %s21, 0
      %s260 = smul.addr %s257, 5
      %s261 = sadd.s32 %s259, %s260
      %s262 = smul.addr %s261, 8
      %s263 = scalar_lea.vmem %s3, %s262
      %p264 = pneg %p160
      %p265 = pneg %p157
      %p266 = scmp.lt.s32.totalorder %s20, 1
      %s267 = scalar_select %p266, %s20, 1
      %p268 = scmp.lt.s32.totalorder %s21, 0
      %s269 = scalar_select %p268, %s21, 0
      %s270 = smul.addr %s267, 5
      %s271 = sadd.s32 %s269, %s270
      %s272 = smul.addr %s271, 8
      %s273 = scalar_lea.vmem %s4, %s272
      %s274 = smul.u32 16, %s21
      %s275 = ssub.s32 17, %s274
      %p276 = scmp.lt.s32.totalorder %s275, 16
      %s277 = scalar_select %p276, %s275, 16
      %s278 = smul.u32 64, %s277
      %p279 = scmp.lt.s32.totalorder %s20, 1
      %s280 = scalar_select %p279, %s20, 1
      %p281 = scmp.lt.s32.totalorder %s274, 16
      %s282 = scalar_select %p281, %s274, 16
      %s283 = smul.addr %s280, 17
      %s284 = sadd.s32 %s282, %s283
      %s285 = smul.addr %s284, 4
      %s286 = scalar_lea.vmem %s0, %s285
      %s287 = smul.u32 16, %s21
      %s288 = ssub.s32 17, %s287
      %p289 = scmp.lt.s32.totalorder %s288, 16
      %s290 = scalar_select %p289, %s288, 16
      %s291 = smul.u32 64, %s290
      %s292 = sadd.s32 %s21, 1
      %s293 = smul.u32 %s292, 16
      %p294 = scmp.lt.s32.totalorder %s20, 1
      %s295 = scalar_select %p294, %s20, 1
      %p296 = scmp.lt.s32.totalorder %s293, 16
      %s297 = scalar_select %p296, %s293, 16
      %s298 = smul.addr %s295, 17
      %s299 = sadd.s32 %s297, %s298
      %s300 = smul.addr %s299, 4
      %s301 = scalar_lea.vmem %s1, %s300
      %s302 = sadd.s32 %s21, 1
      %s303 = smul.u32 %s302, 16
      %p304 = scmp.lt.s32.totalorder %s20, 1
      %s305 = scalar_select %p304, %s20, 1
      %p306 = scmp.lt.s32.totalorder %s21, 0
      %s307 = scalar_select %p306, %s21, 0
      %s308 = smul.addr %s305, 5
      %s309 = sadd.s32 %s307, %s308
      %s310 = smul.addr %s309, 8
      %s311 = scalar_lea.vmem %s3, %s310
      %p312 = scmp.lt.s32.totalorder %s20, 1
      %s313 = scalar_select %p312, %s20, 1
      %p314 = scmp.lt.s32.totalorder %s21, 0
      %s315 = scalar_select %p314, %s21, 0
      %s316 = smul.addr %s313, 5
      %s317 = sadd.s32 %s315, %s316
      %s318 = smul.addr %s317, 8
      %s319 = scalar_lea.vmem %s4, %s318
      %v321 = vld [vmem:[%s286] sm:$0xf]
      %v322 = vld [vmem:[%s286 + $0x4] sm:$0xf]
      %v323 = vld [vmem:[%s286 + $0x8] sm:$0xf]
      %v324 = vld [vmem:[%s286 + $0xc] sm:$0xf]
      %v325 = vld [vmem:[%s286 + $0x10] sm:$0xf]
      %v326 = vld [vmem:[%s286 + $0x14] sm:$0xf]
      %v327 = vld [vmem:[%s286 + $0x18] sm:$0xf]
      %v328 = vld [vmem:[%s286 + $0x1c] sm:$0xf]
      %v329 = vld [vmem:[%s286 + $0x20] sm:$0xf]
      %v330 = vld [vmem:[%s286 + $0x24] sm:$0xf]
      %v331 = vld [vmem:[%s286 + $0x28] sm:$0xf]
      %v332 = vld [vmem:[%s286 + $0x2c] sm:$0xf]
      %v333 = vld [vmem:[%s286 + $0x30] sm:$0xf]
      %v334 = vld [vmem:[%s286 + $0x34] sm:$0xf]
      %v335 = vld [vmem:[%s286 + $0x38] sm:$0xf]
      %v336 = vld [vmem:[%s286 + $0x3c] sm:$0xf]
      %v337 = vld [vmem:[%s301] sm:$0xf]
      %v354 = vunpack.c.l.b16 %v321
      %v355 = vunpack.c.l.b16 %v322
      %v356 = vunpack.c.l.b16 %v323
      %v357 = vunpack.c.l.b16 %v324
      %v358 = vunpack.c.l.b16 %v325
      %v359 = vunpack.c.l.b16 %v326
      %v360 = vunpack.c.l.b16 %v327
      %v361 = vunpack.c.l.b16 %v328
      %v362 = vunpack.c.l.b16 %v329
      %v363 = vunpack.c.l.b16 %v330
      %v364 = vunpack.c.l.b16 %v331
      %v365 = vunpack.c.l.b16 %v332
      %v366 = vunpack.c.l.b16 %v333
      %v367 = vunpack.c.l.b16 %v334
      %v368 = vunpack.c.l.b16 %v335
      %v369 = vunpack.c.l.b16 %v336
      %v370 = vpack.c.b16 %v355, %v354
      %v371 = vpack.c.b16 %v357, %v356
      %v372 = vpack.c.b16 %v359, %v358
      %v373 = vpack.c.b16 %v361, %v360
      %v374 = vpack.c.b16 %v363, %v362
      %v375 = vpack.c.b16 %v365, %v364
      %v376 = vpack.c.b16 %v367, %v366
      %v377 = vpack.c.b16 %v369, %v368
      %vm378 = vsmask.f32 7424
      %v380 = vshrl.u32 %v370, 16
      %v382 = vshll.u32 %v370, 16
      %v384 = vrot.slane %v382, 1
      %v385 = vor.u32 %v380, %v384
      %v387 = vshll.u32 %v371, 16
      %v389 = vrot.slane %v387, 1
      %v390 = vsel %vm378, %v385, %v389
      %v391 = vshrl.u32 %v371, 16
      %v393 = vor.u32 %v391, %v389
      %v395 = vshll.u32 %v372, 16
      %v397 = vrot.slane %v395, 1
      %v398 = vsel %vm378, %v393, %v397
      %v399 = vshrl.u32 %v372, 16
      %v401 = vor.u32 %v399, %v397
      %v403 = vshll.u32 %v373, 16
      %v405 = vrot.slane %v403, 1
      %v406 = vsel %vm378, %v401, %v405
      %v407 = vshrl.u32 %v373, 16
      %v409 = vor.u32 %v407, %v405
      %v411 = vshll.u32 %v374, 16
      %v413 = vrot.slane %v411, 1
      %v414 = vsel %vm378, %v409, %v413
      %v415 = vshrl.u32 %v374, 16
      %v417 = vor.u32 %v415, %v413
      %v419 = vshll.u32 %v375, 16
      %v421 = vrot.slane %v419, 1
      %v422 = vsel %vm378, %v417, %v421
      %v423 = vshrl.u32 %v375, 16
      %v425 = vor.u32 %v423, %v421
      %v427 = vshll.u32 %v376, 16
      %v429 = vrot.slane %v427, 1
      %v430 = vsel %vm378, %v425, %v429
      %v431 = vshrl.u32 %v376, 16
      %v433 = vor.u32 %v431, %v429
      %v435 = vshll.u32 %v377, 16
      %v437 = vrot.slane %v435, 1
      %v438 = vsel %vm378, %v433, %v437
      %v439 = vshrl.u32 %v377, 16
      %v441 = vor.u32 %v439, %v437
      %v443 = vshll.u32 %v337, 16
      %v445 = vrot.slane %v443, 1
      %v446 = vsel %vm378, %v441, %v445
      %447 = vrot.lane.b32.xlu0 %v390, 16
      %v448 = vpop.permute.xlu0 %447
      %449 = vrot.lane.b32.xlu0 %v398, 16
      %v450 = vpop.permute.xlu0 %449
      %451 = vrot.lane.b32.xlu0 %v406, 16
      %v452 = vpop.permute.xlu0 %451
      %453 = vrot.lane.b32.xlu0 %v414, 16
      %v454 = vpop.permute.xlu0 %453
      %455 = vrot.lane.b32.xlu0 %v422, 16
      %v456 = vpop.permute.xlu0 %455
      %457 = vrot.lane.b32.xlu0 %v430, 16
      %v458 = vpop.permute.xlu0 %457
      %459 = vrot.lane.b32.xlu0 %v438, 16
      %v460 = vpop.permute.xlu0 %459
      %461 = vrot.lane.b32.xlu0 %v446, 16
      %v462 = vpop.permute.xlu0 %461
      %vm464 = vcmask 1046528
      %v465 = vrot.slane %v370, 1
      %v466 = vrot.slane %v371, 1
      %v467 = vsel %vm464, %v465, %v466
      %v468 = vrot.slane %v372, 1
      %v469 = vsel %vm464, %v466, %v468
      %v470 = vrot.slane %v373, 1
      %v471 = vsel %vm464, %v468, %v470
      %v472 = vrot.slane %v374, 1
      %v473 = vsel %vm464, %v470, %v472
      %v474 = vrot.slane %v375, 1
      %v475 = vsel %vm464, %v472, %v474
      %v476 = vrot.slane %v376, 1
      %v477 = vsel %vm464, %v474, %v476
      %v478 = vrot.slane %v377, 1
      %v479 = vsel %vm464, %v476, %v478
      %v480 = vrot.slane %v337, 1
      %v481 = vsel %vm464, %v478, %v480
      %482 = vrot.lane.b32.xlu0 %v467, 32
      %v483 = vpop.permute.xlu0 %482
      %484 = vrot.lane.b32.xlu0 %v469, 32
      %v485 = vpop.permute.xlu0 %484
      %486 = vrot.lane.b32.xlu0 %v471, 32
      %v487 = vpop.permute.xlu0 %486
      %488 = vrot.lane.b32.xlu0 %v473, 32
      %v489 = vpop.permute.xlu0 %488
      %490 = vrot.lane.b32.xlu0 %v475, 32
      %v491 = vpop.permute.xlu0 %490
      %492 = vrot.lane.b32.xlu0 %v477, 32
      %v493 = vpop.permute.xlu0 %492
      %494 = vrot.lane.b32.xlu0 %v479, 32
      %v495 = vpop.permute.xlu0 %494
      %496 = vrot.lane.b32.xlu0 %v481, 32
      %v497 = vpop.permute.xlu0 %496
      %vm498 = vsmask.f32 6400
      %v499 = vrot.slane %v380, 1
      %v500 = vrot.slane %v382, 2
      %v501 = vor.u32 %v499, %v500
      %v502 = vrot.slane %v391, 1
      %v503 = vrot.slane %v387, 2
      %v504 = vor.u32 %v502, %v503
      %v505 = vsel %vm498, %v501, %v504
      %v506 = vrot.slane %v399, 1
      %v507 = vrot.slane %v395, 2
      %v508 = vor.u32 %v506, %v507
      %v509 = vsel %vm498, %v504, %v508
      %v510 = vrot.slane %v407, 1
      %v511 = vrot.slane %v403, 2
      %v512 = vor.u32 %v510, %v511
      %v513 = vsel %vm498, %v508, %v512
      %v514 = vrot.slane %v415, 1
      %v515 = vrot.slane %v411, 2
      %v516 = vor.u32 %v514, %v515
      %v517 = vsel %vm498, %v512, %v516
      %v518 = vrot.slane %v423, 1
      %v519 = vrot.slane %v419, 2
      %v520 = vor.u32 %v518, %v519
      %v521 = vsel %vm498, %v516, %v520
      %v522 = vrot.slane %v431, 1
      %v523 = vrot.slane %v427, 2
      %v524 = vor.u32 %v522, %v523
      %v525 = vsel %vm498, %v520, %v524
      %v526 = vrot.slane %v439, 1
      %v527 = vrot.slane %v435, 2
      %v528 = vor.u32 %v526, %v527
      %v529 = vsel %vm498, %v524, %v528
      %v530 = vshrl.u32 %v337, 16
      %v532 = vrot.slane %v530, 1
      %v533 = vrot.slane %v443, 2
      %v534 = vor.u32 %v532, %v533
      %v535 = vsel %vm498, %v528, %v534
      %536 = vrot.lane.b32.xlu0 %v505, 48
      %v537 = vpop.permute.xlu0 %536
      %538 = vrot.lane.b32.xlu0 %v509, 48
      %v539 = vpop.permute.xlu0 %538
      %540 = vrot.lane.b32.xlu0 %v513, 48
      %v541 = vpop.permute.xlu0 %540
      %542 = vrot.lane.b32.xlu0 %v517, 48
      %v543 = vpop.permute.xlu0 %542
      %544 = vrot.lane.b32.xlu0 %v521, 48
      %v545 = vpop.permute.xlu0 %544
      %546 = vrot.lane.b32.xlu0 %v525, 48
      %v547 = vpop.permute.xlu0 %546
      %548 = vrot.lane.b32.xlu0 %v529, 48
      %v549 = vpop.permute.xlu0 %548
      %550 = vrot.lane.b32.xlu0 %v535, 48
      %v551 = vpop.permute.xlu0 %550
      %vm552 = vcmask 130048
      %v554 = vsel %vm552, %v370, %v448
      %v556 = vsel %vm552, %v371, %v450
      %v558 = vsel %vm552, %v372, %v452
      %v560 = vsel %vm552, %v373, %v454
      %v562 = vsel %vm552, %v374, %v456
      %v564 = vsel %vm552, %v375, %v458
      %v566 = vsel %vm552, %v376, %v460
      %v568 = vsel %vm552, %v377, %v462
      %vm569 = vcmask 261120
      %v571 = vsel %vm569, %v554, %v483
      %v573 = vsel %vm569, %v556, %v485
      %v575 = vsel %vm569, %v558, %v487
      %v577 = vsel %vm569, %v560, %v489
      %v579 = vsel %vm569, %v562, %v491
      %v581 = vsel %vm569, %v564, %v493
      %v583 = vsel %vm569, %v566, %v495
      %v585 = vsel %vm569, %v568, %v497
      %vm586 = vcmask 392192
      %v588 = vsel %vm586, %v571, %v537
      %v590 = vsel %vm586, %v573, %v539
      %v592 = vsel %vm586, %v575, %v541
      %v594 = vsel %vm586, %v577, %v543
      %v596 = vsel %vm586, %v579, %v545
      %v598 = vsel %vm586, %v581, %v547
      %v600 = vsel %vm586, %v583, %v549
      %v602 = vsel %vm586, %v585, %v551
      %v603 = vld [vmem:[%s2] sm:$0xf]
      %v604 = vld [vmem:[%s2 + $0x4] sm:$0xf]
      %v605 = vld [vmem:[%s2 + $0x8] sm:$0xf]
      %v606 = vld [vmem:[%s2 + $0xc] sm:$0xf]
      %v607 = vld [vmem:[%s2 + $0x10] sm:$0xf]
      %v608 = vld [vmem:[%s2 + $0x14] sm:$0xf]
      %v609 = vld [vmem:[%s2 + $0x18] sm:$0xf]
      %v610 = vld [vmem:[%s2 + $0x1c] sm:$0xf]
      %v611 = vld [vmem:[%s2 + $0x20] sm:$0xf]
      %v612 = vld [vmem:[%s2 + $0x24] sm:$0xf]
      %v623 = vunpack.c.l.b16 %v603
      %v624 = vunpack.c.l.b16 %v604
      %v625 = vunpack.c.l.b16 %v605
      %v626 = vunpack.c.l.b16 %v606
      %v627 = vunpack.c.l.b16 %v607
      %v628 = vunpack.c.l.b16 %v608
      %v629 = vunpack.c.l.b16 %v609
      %v630 = vunpack.c.l.b16 %v610
      %v631 = vunpack.c.l.b16 %v611
      %v632 = vunpack.c.l.b16 %v612
      %v633 = vpack.c.b16 %v624, %v623
      %v634 = vpack.c.b16 %v626, %v625
      %v635 = vpack.c.b16 %v628, %v627
      %v636 = vpack.c.b16 %v630, %v629
      %v637 = vpack.c.b16 %v632, %v631
      %vm638 = vcmask 523264
      %v640 = vsel %vm638, %v633, 0
      %v643 = vsel %vm638, %v634, 0
      %v646 = vsel %vm638, %v635, 0
      %v649 = vsel %vm638, %v636, 0
      %v652 = vsel %vm638, %v637, 0
      %v654 = vsel %vm638, %v588, 0
      %v656 = vsel %vm638, %v590, 0
      %v658 = vsel %vm638, %v592, 0
      %v660 = vsel %vm638, %v594, 0
      %v662 = vsel %vm638, %v596, 0
      %v664 = vsel %vm638, %v598, 0
      %v666 = vsel %vm638, %v600, 0
      %v668 = vsel %vm638, %v602, 0
      %670 = vmatprep.subr.bf16.mxu0 0
      %671 = vmatpush1.bf16.xpose.msra.mxu0 %v654
      %672 = vmatprep.subr.bf16.mxu0 0
      %673 = vmatpush1.bf16.xpose.msra.mxu0 %v656
      %674 = vmatprep.subr.bf16.mxu0 0
      %675 = vmatpush1.bf16.xpose.msra.mxu0 %v658
      %676 = vmatprep.subr.bf16.mxu0 0
      %677 = vmatpush1.bf16.xpose.msra.mxu0 %v660
      %678 = vmatprep.subr.bf16.mxu0 0
      %679 = vmatpush1.bf16.xpose.msra.mxu0 %v662
      %680 = vmatprep.subr.bf16.mxu0 0
      %681 = vmatpush1.bf16.xpose.msra.mxu0 %v664
      %682 = vmatprep.subr.bf16.mxu0 0
      %683 = vmatpush1.bf16.xpose.msra.mxu0 %v666
      %684 = vmatprep.subr.bf16.mxu0 0
      %685 = vmatpush1.bf16.xpose.msra.mxu0 %v668
      %686 = vmatprep.subr.bf16.mxu0 0
      %687 = vmatpush1.bf16.xpose.msra.mxu0 0
      %688 = vmatprep.subr.bf16.mxu0 0
      %689 = vmatpush1.bf16.xpose.msra.mxu0 0
      %690 = vmatprep.subr.bf16.mxu0 0
      %691 = vmatpush1.bf16.xpose.msra.mxu0 0
      %692 = vmatprep.subr.bf16.mxu0 0
      %693 = vmatpush1.bf16.xpose.msra.mxu0 0
      %694 = vmatprep.subr.bf16.mxu0 0
      %695 = vmatpush1.bf16.xpose.msra.mxu0 0
      %696 = vmatprep.subr.bf16.mxu0 0
      %697 = vmatpush1.bf16.xpose.msra.mxu0 0
      %698 = vmatprep.subr.bf16.mxu0 0
      %699 = vmatpush1.bf16.xpose.msra.mxu0 0
      %700 = vmatprep.subr.bf16.mxu0 0
      %701 = vmatpush1.bf16.xpose.msra.mxu0 0
      %702 = vmatprep.mubr.bf16.mxu0 0
      %703 = vmatmul.mubr.bf16.gmra.mrb[0].mxu0 %v640
      %v704 = vpop.f32.mrb[0].mxu0
      %v705 = vadd.f32 0.0, %v704
      %v706 = vpop.f32.mrb[0].mxu0
      %v707 = vpop.f32.mrb[0].mxu0
      %v708 = vadd.f32 0.0, %v707
      %v709 = vpop.f32.mrb[0].mxu0
      %710 = vmatprep.mubr.bf16.mxu0 0
      %711 = vmatmul.mubr.bf16.gmra.mrb[0].mxu0 %v643
      %v712 = vpop.f32.mrb[0].mxu0
      %v713 = vadd.f32 0.0, %v712
      %v714 = vpop.f32.mrb[0].mxu0
      %v715 = vpop.f32.mrb[0].mxu0
      %v716 = vadd.f32 0.0, %v715
      %v717 = vpop.f32.mrb[0].mxu0
      %718 = vmatprep.mubr.bf16.mxu0 0
      %719 = vmatmul.mubr.bf16.gmra.mrb[0].mxu0 %v646
      %v720 = vpop.f32.mrb[0].mxu0
      %v721 = vadd.f32 0.0, %v720
      %v722 = vpop.f32.mrb[0].mxu0
      %v723 = vpop.f32.mrb[0].mxu0
      %v724 = vadd.f32 0.0, %v723
      %v725 = vpop.f32.mrb[0].mxu0
      %726 = vmatprep.mubr.bf16.mxu0 0
      %727 = vmatmul.mubr.bf16.gmra.mrb[0].mxu0 %v649
      %v728 = vpop.f32.mrb[0].mxu0
      %v729 = vadd.f32 0.0, %v728
      %v730 = vpop.f32.mrb[0].mxu0
      %v731 = vpop.f32.mrb[0].mxu0
      %v732 = vadd.f32 0.0, %v731
      %v733 = vpop.f32.mrb[0].mxu0
      %734 = vmatprep.mubr.bf16.mxu0 0
      %735 = vmatmul.mubr.bf16.gmra.mrb[0].mxu0 %v652
      %v736 = vpop.f32.mrb[0].mxu0
      %v737 = vadd.f32 0.0, %v736
      %v738 = vpop.f32.mrb[0].mxu0
      %v739 = vpop.f32.mrb[0].mxu0
      %v740 = vadd.f32 0.0, %v739
      %v741 = vpop.f32.mrb[0].mxu0
      %742 = vdwg.mxu0
      %v743 = vmul.f32 %v705, %v705
      %v744 = vmul.f32 %v708, %v708
      %v745 = vmul.f32 %v713, %v713
      %v746 = vmul.f32 %v716, %v716
      %v747 = vmul.f32 %v721, %v721
      %v748 = vmul.f32 %v724, %v724
      %v749 = vmul.f32 %v729, %v729
      %v750 = vmul.f32 %v732, %v732
      %v751 = vmul.f32 %v737, %v737
      %v752 = vmul.f32 %v740, %v740
      %v753 = vadd.f32 %v743, %v748
      %v754 = vadd.f32 %v744, %v749
      %v755 = vadd.f32 %v745, %v750
      %v756 = vadd.f32 %v746, %v751
      %v757 = vadd.f32 %v747, %v752
      %v758 = vrsqrt.pop %v753
      %v759 = vmul.f32 %v753, %v758
      %vm760 = vcmp.eq.f32.partialorder %v753, inf
      %v761 = vsel %vm760, %v753, %v759
      %vm762 = vcmp.eq.f32.partialorder %v753, 0.0
      %v763 = vand.u32 %v753, 2147483648
      %v764 = vsel %vm762, %v763, %v761
      %v765 = vrsqrt.pop %v754
      %v766 = vmul.f32 %v754, %v765
      %vm767 = vcmp.eq.f32.partialorder %v754, inf
      %v768 = vsel %vm767, %v754, %v766
      %vm769 = vcmp.eq.f32.partialorder %v754, 0.0
      %v770 = vand.u32 %v754, 2147483648
      %v771 = vsel %vm769, %v770, %v768
      %v772 = vrsqrt.pop %v755
      %v773 = vmul.f32 %v755, %v772
      %vm774 = vcmp.eq.f32.partialorder %v755, inf
      %v775 = vsel %vm774, %v755, %v773
      %vm776 = vcmp.eq.f32.partialorder %v755, 0.0
      %v777 = vand.u32 %v755, 2147483648
      %v778 = vsel %vm776, %v777, %v775
      %v779 = vrsqrt.pop %v756
      %v780 = vmul.f32 %v756, %v779
      %vm781 = vcmp.eq.f32.partialorder %v756, inf
      %v782 = vsel %vm781, %v756, %v780
      %vm783 = vcmp.eq.f32.partialorder %v756, 0.0
      %v784 = vand.u32 %v756, 2147483648
      %v785 = vsel %vm783, %v784, %v782
      %v786 = vrsqrt.pop %v757
      %v787 = vmul.f32 %v757, %v786
      %vm788 = vcmp.eq.f32.partialorder %v757, inf
      %v789 = vsel %vm788, %v757, %v787
      %vm790 = vcmp.eq.f32.partialorder %v757, 0.0
      %v791 = vand.u32 %v757, 2147483648
      %v792 = vsel %vm790, %v791, %v789
      %793 = vst [vmem:[%s311] sm:$0xff] %v764
      %794 = vst [vmem:[%s311 + $0x8] sm:$0xff] %v771
      %795 = vst [vmem:[%s311 + $0x10] sm:$0xff] %v778
      %796 = vst [vmem:[%s311 + $0x18] sm:$0xff] %v785
      %797 = vst [vmem:[%s311 + $0x20] sm:$0x1] %v792
      %v798 = vand.u32 2147483647, %v705
      %v799 = vand.u32 2147483647, %v724
      %v800 = vmin.f32 %v798, %v799
      %v801 = vmax.f32 %v798, %v799
      %v802 = vrcp.pop %v801
      %v803 = vmul.f32 %v800, %v802
      %v804 = vmul.f32 %v803, %v803
      %v805 = vmul.f32 0.002785687, %v804
      %v806 = vadd.f32 %v805, -0.015866
      %v807 = vmul.f32 %v806, %v804
      %v808 = vadd.f32 %v807, 0.04247222
      %v809 = vmul.f32 %v808, %v804
      %v810 = vadd.f32 %v809, -0.074975304
      %v811 = vmul.f32 %v810, %v804
      %v812 = vadd.f32 %v811, 0.1064488
      %v813 = vmul.f32 %v812, %v804
      %v814 = vadd.f32 %v813, -0.14207031
      %v815 = vmul.f32 %v814, %v804
      %v816 = vadd.f32 %v815, 0.19993454
      %v817 = vmul.f32 %v816, %v804
      %v818 = vadd.f32 %v817, -0.33333147
      %v819 = vmul.f32 %v818, %v804
      %v820 = vmul.f32 %v819, %v803
      %v821 = vadd.f32 %v820, %v803
      %vm822 = vcmp.gt.f32.partialorder %v799, %v798
      %v823 = vsub.f32 1.5707964, %v821
      %v824 = vsel %vm822, %v823, %v821
      %vm825 = vcmp.lt.f32.partialorder %v705, 0.0
      %v826 = vsub.f32 3.1415927, %v824
      %v827 = vsel %vm825, %v826, %v824
      %vm828 = vcmp.lt.s32.totalorder %v705, 0
      %v829 = vsel %vm828, 3.1415927, 0.0
      %vm830 = vcmp.eq.f32.partialorder %v724, 0.0
      %v831 = vsel %vm830, %v829, %v827
      %vm832 = vcmp.ne.f32.partialorder %v705, %v705
      %vm833 = vcmp.ne.f32.partialorder %v724, %v724
      %vm834 = vmor %vm832, %vm833
      %v835 = vsel %vm834, nan, %v831
      %vm836 = vcmp.lt.f32.partialorder %v705, 0.0
      %v837 = vsel %vm836, 2.3561945, 0.7853982
      %vm838 = vcmp.eq.s32.totalorder %v798, inf
      %vm839 = vcmp.eq.s32.totalorder %v799, inf
      %vm840 = vmand %vm838, %vm839
      %v841 = vsel %vm840, %v837, %v835
      %v842 = vand.u32 2147483647, %v841
      %v843 = vand.u32 %v724, 2147483648
      %v844 = vor.u32 %v842, %v843
      %v845 = vand.u32 2147483647, %v708
      %v846 = vand.u32 2147483647, %v729
      %v847 = vmin.f32 %v845, %v846
      %v848 = vmax.f32 %v845, %v846
      %v849 = vrcp.pop %v848
      %v850 = vmul.f32 %v847, %v849
      %v851 = vmul.f32 %v850, %v850
      %v852 = vmul.f32 0.002785687, %v851
      %v853 = vadd.f32 %v852, -0.015866
      %v854 = vmul.f32 %v853, %v851
      %v855 = vadd.f32 %v854, 0.04247222
      %v856 = vmul.f32 %v855, %v851
      %v857 = vadd.f32 %v856, -0.074975304
      %v858 = vmul.f32 %v857, %v851
      %v859 = vadd.f32 %v858, 0.1064488
      %v860 = vmul.f32 %v859, %v851
      %v861 = vadd.f32 %v860, -0.14207031
      %v862 = vmul.f32 %v861, %v851
      %v863 = vadd.f32 %v862, 0.19993454
      %v864 = vmul.f32 %v863, %v851
      %v865 = vadd.f32 %v864, -0.33333147
      %v866 = vmul.f32 %v865, %v851
      %v867 = vmul.f32 %v866, %v850
      %v868 = vadd.f32 %v867, %v850
      %vm869 = vcmp.gt.f32.partialorder %v846, %v845
      %v870 = vsub.f32 1.5707964, %v868
      %v871 = vsel %vm869, %v870, %v868
      %vm872 = vcmp.lt.f32.partialorder %v708, 0.0
      %v873 = vsub.f32 3.1415927, %v871
      %v874 = vsel %vm872, %v873, %v871
      %vm875 = vcmp.lt.s32.totalorder %v708, 0
      %v876 = vsel %vm875, 3.1415927, 0.0
      %vm877 = vcmp.eq.f32.partialorder %v729, 0.0
      %v878 = vsel %vm877, %v876, %v874
      %vm879 = vcmp.ne.f32.partialorder %v708, %v708
      %vm880 = vcmp.ne.f32.partialorder %v729, %v729
      %vm881 = vmor %vm879, %vm880
      %v882 = vsel %vm881, nan, %v878
      %vm883 = vcmp.lt.f32.partialorder %v708, 0.0
      %v884 = vsel %vm883, 2.3561945, 0.7853982
      %vm885 = vcmp.eq.s32.totalorder %v845, inf
      %vm886 = vcmp.eq.s32.totalorder %v846, inf
      %vm887 = vmand %vm885, %vm886
      %v888 = vsel %vm887, %v884, %v882
      %v889 = vand.u32 2147483647, %v888
      %v890 = vand.u32 %v729, 2147483648
      %v891 = vor.u32 %v889, %v890
      %v892 = vand.u32 2147483647, %v713
      %v893 = vand.u32 2147483647, %v732
      %v894 = vmin.f32 %v892, %v893
      %v895 = vmax.f32 %v892, %v893
      %v896 = vrcp.pop %v895
      %v897 = vmul.f32 %v894, %v896
      %v898 = vmul.f32 %v897, %v897
      %v899 = vmul.f32 0.002785687, %v898
      %v900 = vadd.f32 %v899, -0.015866
      %v901 = vmul.f32 %v900, %v898
      %v902 = vadd.f32 %v901, 0.04247222
      %v903 = vmul.f32 %v902, %v898
      %v904 = vadd.f32 %v903, -0.074975304
      %v905 = vmul.f32 %v904, %v898
      %v906 = vadd.f32 %v905, 0.1064488
      %v907 = vmul.f32 %v906, %v898
      %v908 = vadd.f32 %v907, -0.14207031
      %v909 = vmul.f32 %v908, %v898
      %v910 = vadd.f32 %v909, 0.19993454
      %v911 = vmul.f32 %v910, %v898
      %v912 = vadd.f32 %v911, -0.33333147
      %v913 = vmul.f32 %v912, %v898
      %v914 = vmul.f32 %v913, %v897
      %v915 = vadd.f32 %v914, %v897
      %vm916 = vcmp.gt.f32.partialorder %v893, %v892
      %v917 = vsub.f32 1.5707964, %v915
      %v918 = vsel %vm916, %v917, %v915
      %vm919 = vcmp.lt.f32.partialorder %v713, 0.0
      %v920 = vsub.f32 3.1415927, %v918
      %v921 = vsel %vm919, %v920, %v918
      %vm922 = vcmp.lt.s32.totalorder %v713, 0
      %v923 = vsel %vm922, 3.1415927, 0.0
      %vm924 = vcmp.eq.f32.partialorder %v732, 0.0
      %v925 = vsel %vm924, %v923, %v921
      %vm926 = vcmp.ne.f32.partialorder %v713, %v713
      %vm927 = vcmp.ne.f32.partialorder %v732, %v732
      %vm928 = vmor %vm926, %vm927
      %v929 = vsel %vm928, nan, %v925
      %vm930 = vcmp.lt.f32.partialorder %v713, 0.0
      %v931 = vsel %vm930, 2.3561945, 0.7853982
      %vm932 = vcmp.eq.s32.totalorder %v892, inf
      %vm933 = vcmp.eq.s32.totalorder %v893, inf
      %vm934 = vmand %vm932, %vm933
      %v935 = vsel %vm934, %v931, %v929
      %v936 = vand.u32 2147483647, %v935
      %v937 = vand.u32 %v732, 2147483648
      %v938 = vor.u32 %v936, %v937
      %v939 = vand.u32 2147483647, %v716
      %v940 = vand.u32 2147483647, %v737
      %v941 = vmin.f32 %v939, %v940
      %v942 = vmax.f32 %v939, %v940
      %v943 = vrcp.pop %v942
      %v944 = vmul.f32 %v941, %v943
      %v945 = vmul.f32 %v944, %v944
      %v946 = vmul.f32 0.002785687, %v945
      %v947 = vadd.f32 %v946, -0.015866
      %v948 = vmul.f32 %v947, %v945
      %v949 = vadd.f32 %v948, 0.04247222
      %v950 = vmul.f32 %v949, %v945
      %v951 = vadd.f32 %v950, -0.074975304
      %v952 = vmul.f32 %v951, %v945
      %v953 = vadd.f32 %v952, 0.1064488
      %v954 = vmul.f32 %v953, %v945
      %v955 = vadd.f32 %v954, -0.14207031
      %v956 = vmul.f32 %v955, %v945
      %v957 = vadd.f32 %v956, 0.19993454
      %v958 = vmul.f32 %v957, %v945
      %v959 = vadd.f32 %v958, -0.33333147
      %v960 = vmul.f32 %v959, %v945
      %v961 = vmul.f32 %v960, %v944
      %v962 = vadd.f32 %v961, %v944
      %vm963 = vcmp.gt.f32.partialorder %v940, %v939
      %v964 = vsub.f32 1.5707964, %v962
      %v965 = vsel %vm963, %v964, %v962
      %vm966 = vcmp.lt.f32.partialorder %v716, 0.0
      %v967 = vsub.f32 3.1415927, %v965
      %v968 = vsel %vm966, %v967, %v965
      %vm969 = vcmp.lt.s32.totalorder %v716, 0
      %v970 = vsel %vm969, 3.1415927, 0.0
      %vm971 = vcmp.eq.f32.partialorder %v737, 0.0
      %v972 = vsel %vm971, %v970, %v968
      %vm973 = vcmp.ne.f32.partialorder %v716, %v716
      %vm974 = vcmp.ne.f32.partialorder %v737, %v737
      %vm975 = vmor %vm973, %vm974
      %v976 = vsel %vm975, nan, %v972
      %vm977 = vcmp.lt.f32.partialorder %v716, 0.0
      %v978 = vsel %vm977, 2.3561945, 0.7853982
      %vm979 = vcmp.eq.s32.totalorder %v939, inf
      %vm980 = vcmp.eq.s32.totalorder %v940, inf
      %vm981 = vmand %vm979, %vm980
      %v982 = vsel %vm981, %v978, %v976
      %v983 = vand.u32 2147483647, %v982
      %v984 = vand.u32 %v737, 2147483648
      %v985 = vor.u32 %v983, %v984
      %v986 = vand.u32 2147483647, %v721
      %v987 = vand.u32 2147483647, %v740
      %v988 = vmin.f32 %v986, %v987
      %v989 = vmax.f32 %v986, %v987
      %v990 = vrcp.pop %v989
      %v991 = vmul.f32 %v988, %v990
      %v992 = vmul.f32 %v991, %v991
      %v993 = vmul.f32 0.002785687, %v992
      %v994 = vadd.f32 %v993, -0.015866
      %v995 = vmul.f32 %v994, %v992
      %v996 = vadd.f32 %v995, 0.04247222
      %v997 = vmul.f32 %v996, %v992
      %v998 = vadd.f32 %v997, -0.074975304
      %v999 = vmul.f32 %v998, %v992
      %v1000 = vadd.f32 %v999, 0.1064488
      %v1001 = vmul.f32 %v1000, %v992
      %v1002 = vadd.f32 %v1001, -0.14207031
      %v1003 = vmul.f32 %v1002, %v992
      %v1004 = vadd.f32 %v1003, 0.19993454
      %v1005 = vmul.f32 %v1004, %v992
      %v1006 = vadd.f32 %v1005, -0.33333147
      %v1007 = vmul.f32 %v1006, %v992
      %v1008 = vmul.f32 %v1007, %v991
      %v1009 = vadd.f32 %v1008, %v991
      %vm1010 = vcmp.gt.f32.partialorder %v987, %v986
      %v1011 = vsub.f32 1.5707964, %v1009
      %v1012 = vsel %vm1010, %v1011, %v1009
      %vm1013 = vcmp.lt.f32.partialorder %v721, 0.0
      %v1014 = vsub.f32 3.1415927, %v1012
      %v1015 = vsel %vm1013, %v1014, %v1012
      %vm1016 = vcmp.lt.s32.totalorder %v721, 0
      %v1017 = vsel %vm1016, 3.1415927, 0.0
      %vm1018 = vcmp.eq.f32.partialorder %v740, 0.0
      %v1019 = vsel %vm1018, %v1017, %v1015
      %vm1020 = vcmp.ne.f32.partialorder %v721, %v721
      %vm1021 = vcmp.ne.f32.partialorder %v740, %v740
      %vm1022 = vmor %vm1020, %vm1021
      %v1023 = vsel %vm1022, nan, %v1019
      %vm1024 = vcmp.lt.f32.partialorder %v721, 0.0
      %v1025 = vsel %vm1024, 2.3561945, 0.7853982
      %vm1026 = vcmp.eq.s32.totalorder %v986, inf
      %vm1027 = vcmp.eq.s32.totalorder %v987, inf
      %vm1028 = vmand %vm1026, %vm1027
      %v1029 = vsel %vm1028, %v1025, %v1023
      %v1030 = vand.u32 2147483647, %v1029
      %v1031 = vand.u32 %v740, 2147483648
      %v1032 = vor.u32 %v1030, %v1031
      %1033 = vst [vmem:[%s319] sm:$0xff] %v844
      %1034 = vst [vmem:[%s319 + $0x8] sm:$0xff] %v891
      %1035 = vst [vmem:[%s319 + $0x10] sm:$0xff] %v938
      %1036 = vst [vmem:[%s319 + $0x18] sm:$0xff] %v985
      %1037 = vst [vmem:[%s319 + $0x20] sm:$0x1] %v1032
      %p1038 = scmp.lt.s32.totalorder %s20, 1
      %s1039 = scalar_select %p1038, %s20, 1
      %p1040 = scmp.lt.s32.totalorder %s21, 0
      %s1041 = scalar_select %p1040, %s21, 0
      %s1042 = smul.addr %s1039, 5
      %s1043 = sadd.s32 %s1041, %s1042
      %s1044 = smul.addr %s1043, 8
      %s1045 = scalar_lea.vmem %s3, %s1044
      %p1046 = scmp.lt.s32.totalorder %s20, 1
      %s1047 = scalar_select %p1046, %s20, 1
      %p1048 = scmp.lt.s32.totalorder %s21, 0
      %s1049 = scalar_select %p1048, %s21, 0
      %s1050 = smul.addr %s1047, 5
      %s1051 = sadd.s32 %s1049, %s1050
      %s1052 = smul.addr %s1051, 8
      %s1053 = scalar_lea.vmem %s4, %s1052
      // Predicated region
      $region33: #{_lambda_.1} parent=31 // pred_check
        %p1054 = pneg %p129
      $region34: #{_lambda_.1} parent=31 // pred_check_branch
        %1056 = sbr.rel (%p1054) target = $region36
      $region35: #{_lambda_.1} parent=31 // pred_region
        _
      $region36: #{_lambda_.1} parent=31 // pred_fallthru
        _
      // Predicated region
      $region37: #{_lambda_.1} parent=31 // pred_check
        %p1057 = pneg %p157
      $region38: #{_lambda_.1} parent=31 // pred_check_branch
        %1059 = sbr.rel (%p1057) target = $region40
      $region39: #{_lambda_.1} parent=31 // pred_region
        _
      $region40: #{_lambda_.1} parent=31 // pred_fallthru
        _
    $region32: #{_lambda_.1} parent=5 // pred_fallthru
      _
    %p1060 = scmp.le.s32.totalorder 2, %s11
    // Predicated region
    $region41: #{_lambda_.1} parent=5 // pred_check
      %p1061 = pneg %p1060
    $region42: #{_lambda_.1} parent=5 // pred_check_branch
      %1063 = sbr.rel (%p1061) target = $region44
    $region43: #{_lambda_.1} parent=5 // pred_region
      %s1064 = ssub.s32 %s11, 2
      // Predicated region
      $region45: #{_lambda_.1} parent=43 // pred_check
        %p1065 = pneg %p135
      $region46: #{_lambda_.1} parent=43 // pred_check_branch
        %1067 = sbr.rel (%p1065) target = $region48
      $region47: #{_lambda_.1} parent=43 // pred_region
        %p1068 = scmp.lt.s32.totalorder %s22, 1
        %s1069 = scalar_select %p1068, %s22, 1
        %p1070 = scmp.lt.s32.totalorder %s23, 0
        %s1071 = scalar_select %p1070, %s23, 0
        %s1072 = smul.addr %s1069, 5
        %s1073 = sadd.s32 %s1071, %s1072
        %s1074 = smul.addr %s1073, 8
        %s1075 = scalar_lea.vmem %s3, %s1074
      $region48: #{_lambda_.1} parent=43 // pred_fallthru
        _
      // Predicated region
      $region49: #{_lambda_.1} parent=43 // pred_check
        %p1076 = pneg %p163
      $region50: #{_lambda_.1} parent=43 // pred_check_branch
        %1078 = sbr.rel (%p1076) target = $region52
      $region51: #{_lambda_.1} parent=43 // pred_region
        %p1079 = scmp.lt.s32.totalorder %s22, 1
        %s1080 = scalar_select %p1079, %s22, 1
        %p1081 = scmp.lt.s32.totalorder %s23, 0
        %s1082 = scalar_select %p1081, %s23, 0
        %s1083 = smul.addr %s1080, 5
        %s1084 = sadd.s32 %s1082, %s1083
        %s1085 = smul.addr %s1084, 8
        %s1086 = scalar_lea.vmem %s4, %s1085
      $region52: #{_lambda_.1} parent=43 // pred_fallthru
        _
    $region44: #{_lambda_.1} parent=5 // pred_fallthru
      _
  $region6: #{_lambda_.1} parent=0 // loop_footer
    %s15 = sadd.s32 1, %s11
  $region7: #{_lambda_.1} parent=0 // loop_footer_branch
    %10 = sbr.rel target = $region3
  $region8: #{_lambda_.1} parent=0 // loop_exit
    _

</llo_original>
